<compile_context>
chip_gen: v7x
topology: tpu7x:2x2x1
jax: 0.10.0
libtpu: 0.0.40
codegen_flags: <defaults>
</compile_context>

<pallas_src>
import math

import numpy as np

import jax
import jax.numpy as jnp
from jax.experimental import pallas as pl
from jax.experimental.pallas import tpu as pltpu

_LANE = 128


# ----------------------------- host-side packing -----------------------------

def _adaptive_windows(l_in, l_out):
    """torch.nn.AdaptiveMaxPool1d window boundaries."""
    return [(int(math.floor(i * l_in / l_out)),
             int(math.ceil((i + 1) * l_in / l_out))) for i in range(l_out)]


def _conv_toeplitz(w, l_in):
    """Conv1d (valid, stride 1) as a right-matmul matrix.

    w: (Cout, Cin, K).  Returns A of shape (Cin*l_in, Cout*l_out) with
    A[ci*l_in + l + k, co*l_out + l] = w[co, ci, k], so that for x_flat whose
    lanes are ci*l_in + m:  y[n, co*l_out + l] = (x_flat @ A)[n, co*l_out + l].
    """
    cout, cin, k = w.shape
    l_out = l_in - k + 1
    a = np.zeros((cin * l_in, cout * l_out), np.float32)
    for co in range(cout):
        for ci in range(cin):
            for kk in range(k):
                for l in range(l_out):
                    a[ci * l_in + l + kk, co * l_out + l] = w[co, ci, kk]
    return a


def _pool_selection(channels, l_in, windows):
    """Channel-block-diagonal 0/1 selection matrices S_d of shape
    (channels*l_in, channels*l_out), one per window depth, with exactly one 1
    per output column, so maxpool(x) == max_d (x @ S_d) exactly."""
    l_out = len(windows)
    depth = max(e - s for s, e in windows)
    mats = []
    for d in range(depth):
        s_mat = np.zeros((channels * l_in, channels * l_out), np.float32)
        for c in range(channels):
            for i, (s, e) in enumerate(windows):
                s_mat[c * l_in + min(s + d, e - 1), c * l_out + i] = 1.0
        mats.append(s_mat)
    return mats


def _pack_slab(sections, width):
    """Pack named 2-D f32 arrays into one (rows, width) slab; every section
    starts at an 8-aligned row.  Returns (slab, layout) with
    layout[name] = (row_offset, (rows, cols))."""
    layout = {}
    blocks = []
    row = 0
    for name, mat in sections:
        mat = np.asarray(mat, np.float32)
        if mat.ndim == 1:
            mat = mat[None, :]
        h, w = mat.shape
        assert w <= width, (name, w, width)
        padded = np.zeros((h, width), np.float32)
        padded[:, :w] = mat
        layout[name] = (row, (h, w))
        blocks.append(padded)
        row += h
        if row % 8:
            fill = 8 - row % 8
            blocks.append(np.zeros((fill, width), np.float32))
            row += fill
    return jnp.asarray(np.concatenate(blocks, axis=0)), layout


# ------------------------------ fused kernel --------------------------------

def _make_lenet_kernel(layout, sel1, sel2):
    """Kernel closure over the static slab layout (offsets / shapes)."""

    def kernel(x_ref, p_ref, o_ref):
        f32 = jnp.float32

        def sec(name):
            row, (h, w) = layout[name]
            return p_ref[row:row + h, 0:w]

        def mm(a, b):
            return jnp.dot(a, b, preferred_element_type=f32)

        x = x_ref[...]                                         # (BN, Cin*L)

        # conv1 + bias + ReLU: one Toeplitz MXU matmul over the whole batch.
        y1 = jnp.maximum(mm(x, sec("a1")) + sec("b1"), 0.0)    # (BN, C1*L1)

        # MaxPool1d(2,2): exact 0/1 selection matmuls + one VPU max.
        p1 = mm(y1, sec(sel1[0]))
        for name in sel1[1:]:
            p1 = jnp.maximum(p1, mm(y1, sec(name)))            # (BN, C1*Lp1)

        # conv2 + bias + ReLU: one Toeplitz MXU matmul.
        y2 = jnp.maximum(mm(p1, sec("a2")) + sec("b2"), 0.0)   # (BN, C2*L2)

        # AdaptiveMaxPool1d(P2): same selection-matmul trick.  Resulting lane
        # order c2*P2 + p already equals PyTorch's flatten order (no reshape).
        q2 = mm(y2, sec(sel2[0]))
        for name in sel2[1:]:
            q2 = jnp.maximum(q2, mm(y2, sec(name)))            # (BN, C2*P2)

        # fc1 -> fc2 -> fc3: three plain batched MXU matmuls.
        f1 = jnp.maximum(mm(q2, sec("fw1t")) + sec("fb1"), 0.0)
        f2 = jnp.maximum(mm(f1, sec("fw2t")) + sec("fb2"), 0.0)
        # Single lane-dense (BN, 128) store (101 real outputs + zero padding).
        o_ref[...] = mm(f2, sec("fw3t")) + sec("fb3")

    return kernel


# ------------------------------ host-side glue -------------------------------

def build_lenet_forward(params, in_len, *, batch_blocks=1):
    """Pack PyTorch-layout params into one f32 slab and build the jitted
    forward.  Returns (forward_fn, slab) with forward_fn(x, slab) -> (N, 101).

    batch_blocks: grid steps over the batch.  Keep 1 on v5e/v6e (one
    TensorCore -- a grid is just a serial loop).  On v7x with a large batch,
    use 2 so the "parallel" batch axis is sharded across both TensorCores
    (requires N % batch_blocks == 0 and (N // batch_blocks) % 8 == 0).
    """
    f32 = np.float32
    w1 = np.asarray(params["w1"], f32)    # (C1, Cin, K1)
    b1 = np.asarray(params["b1"], f32)
    w2 = np.asarray(params["w2"], f32)    # (C2, C1, K2)
    b2 = np.asarray(params["b2"], f32)
    fw1 = np.asarray(params["fw1"], f32)  # (H1, C2*P2)
    fb1 = np.asarray(params["fb1"], f32)
    fw2 = np.asarray(params["fw2"], f32)  # (H2, H1)
    fb2 = np.asarray(params["fb2"], f32)
    fw3 = np.asarray(params["fw3"], f32)  # (OUT, H2)
    fb3 = np.asarray(params["fb3"], f32)

    c1, cin, k1 = w1.shape
    c2, _, k2 = w2.shape
    out_dim = fw3.shape[0]

    l0 = in_len
    l1 = l0 - k1 + 1                                   # conv1 output length
    p1_windows = [(2 * i, 2 * i + 2) for i in range((l1 - 2) // 2 + 1)]
    lp1 = len(p1_windows)                              # MaxPool1d(2,2) length
    l2 = lp1 - k2 + 1                                  # conv2 output length
    p2 = fw1.shape[1] // c2                            # adaptive pool size (5)
    p2_windows = _adaptive_windows(l2, p2)

    out_pad = ((out_dim + _LANE - 1) // _LANE) * _LANE
    fw3t_pad = np.zeros((fw3.shape[1], out_pad), f32)
    fw3t_pad[:, :out_dim] = fw3.T
    fb3_pad = np.zeros((1, out_pad), f32)
    fb3_pad[0, :out_dim] = fb3

    s1 = _pool_selection(c1, l1, p1_windows)
    s2 = _pool_selection(c2, l2, p2_windows)
    sections = [
        ("a1", _conv_toeplitz(w1, l0)),                 # (Cin*L,  C1*L1)
        ("b1", np.repeat(b1, l1)),                      # (1, C1*L1)
        *[(f"s1_{d}", m) for d, m in enumerate(s1)],    # (C1*L1, C1*Lp1) each
        ("a2", _conv_toeplitz(w2, lp1)),                # (C1*Lp1, C2*L2)
        ("b2", np.repeat(b2, l2)),                      # (1, C2*L2)
        *[(f"s2_{d}", m) for d, m in enumerate(s2)],    # (C2*L2, C2*P2) each
        ("fw1t", fw1.T),                                # (C2*P2, H1)
        ("fb1", fb1),                                   # (1, H1)
        ("fw2t", fw2.T),                                # (H1, H2)
        ("fb2", fb2),                                   # (1, H2)
        ("fw3t", fw3t_pad),                             # (H2, OUT_PAD)
        ("fb3", fb3_pad),                               # (1, OUT_PAD)
    ]
    width = ((max(np.asarray(m).shape[-1] for _, m in sections) + _LANE - 1)
             // _LANE) * _LANE
    slab, layout = _pack_slab(sections, width)          # ~0.9 MiB, one operand

    kernel = _make_lenet_kernel(
        layout,
        sel1=[f"s1_{d}" for d in range(len(s1))],
        sel2=[f"s2_{d}" for d in range(len(s2))],
    )
    feat_in = cin * l0

    def forward(x, slab_arg):
        n = x.shape[0]
        assert n % batch_blocks == 0
        bn = n // batch_blocks
        if batch_blocks > 1 and bn % 8:
            raise ValueError("batch_blocks > 1 requires (N/batch_blocks) % 8 == 0")
        x_flat = x.astype(jnp.float32).reshape(n, feat_in)
        out = pl.pallas_call(
            kernel,
            out_shape=jax.ShapeDtypeStruct((n, out_pad), jnp.float32),
            grid=(batch_blocks,),
            in_specs=[
                pl.BlockSpec((bn, feat_in), lambda i: (i, 0)),
                pl.BlockSpec(slab_arg.shape, lambda i: (0, 0)),
            ],
            out_specs=pl.BlockSpec((bn, out_pad), lambda i: (i, 0)),
            compiler_params=pltpu.CompilerParams(
                dimension_semantics=("parallel",)),
        )(x_flat, slab_arg)
        return out[:, :out_dim]

    return jax.jit(forward), slab


# ------------------------- pure-JAX reference (check) ------------------------

def lenet_reference(x, p):
    hp = jax.lax.Precision.HIGHEST
    n, _, l0 = x.shape
    c1, _, k1 = p["w1"].shape
    c2, _, k2 = p["w2"].shape
    l1 = l0 - k1 + 1
    cols = jnp.stack([x[:, :, k:k + l1] for k in range(k1)], axis=3)
    y1 = jnp.einsum("nclk,ock->nol", cols, p["w1"], precision=hp) \
        + p["b1"][None, :, None]
    y1 = jnp.maximum(y1, 0.0)
    lp1 = (l1 - 2) // 2 + 1
    p1 = jnp.max(y1[:, :, :2 * lp1].reshape(n, c1, lp1, 2), axis=-1)
    l2 = lp1 - k2 + 1
    cols2 = jnp.stack([p1[:, :, k:k + l2] for k in range(k2)], axis=3)
    y2 = jnp.einsum("nclk,ock->nol", cols2, p["w2"], precision=hp) \
        + p["b2"][None, :, None]
    y2 = jnp.maximum(y2, 0.0)
    pool2 = jnp.stack([jnp.max(y2[:, :, s:e], axis=-1)
                       for s, e in _adaptive_windows(l2, 5)], axis=-1)
    f = pool2.reshape(n, -1)
    f = jnp.maximum(jnp.dot(f, p["fw1"].T, precision=hp) + p["fb1"], 0.0)
    f = jnp.maximum(jnp.dot(f, p["fw2"].T, precision=hp) + p["fb2"], 0.0)
    return jnp.dot(f, p["fw3"].T, precision=hp) + p["fb3"]


# ------------------------------ parameter init -------------------------------

def init_params(key, in_channel=1, out_channel=101):
    ks = jax.random.split(key, 10)

    def u(k, shape, fan_in):
        bound = 1.0 / math.sqrt(fan_in)
        return jax.random.uniform(k, shape, jnp.float32, -bound, bound)

    return {
        "w1": u(ks[0], (6, in_channel, 5), in_channel * 5),
        "b1": u(ks[1], (6,), in_channel * 5),
        "w2": u(ks[2], (16, 6, 5), 6 * 5),
        "b2": u(ks[3], (16,), 6 * 5),
        "fw1": u(ks[4], (30, 16 * 5), 16 * 5),
        "fb1": u(ks[5], (30,), 16 * 5),
        "fw2": u(ks[6], (10, 30), 30),
        "fb2": u(ks[7], (10,), 30),
        "fw3": u(ks[8], (out_channel, 10), 10),
        "fb3": u(ks[9], (out_channel,), 10),
    }


# ----------------------------------- main ------------------------------------

if __name__ == "__main__":
    key = jax.random.PRNGKey(0)
    kx, kparam = jax.random.split(key)

    # Input consistent with the Conv1d stack: (batch=2, in_channel=1, length=32)
    x = jax.random.normal(kx, (2, 1, 32), dtype=jnp.float32)
    params = init_params(kparam)

    # One-time host-side packing (outside jit); single grid point (v5e/v6e).
    forward, slab = build_lenet_forward(params, in_len=32, batch_blocks=1)

    out = jax.block_until_ready(forward(x, slab))
    assert out.shape == (2, 101), out.shape
    assert out.dtype == jnp.float32

    ref = jax.block_until_ready(jax.jit(lenet_reference)(x, params))
    err = float(jnp.max(jnp.abs(out - ref)))
    tol = 1e-5 * max(1.0, float(jnp.max(jnp.abs(ref))))   # ~1e-5, all-f32 path
    assert err < tol, f"max abs error {err} vs tolerance {tol}"

    print("KERNEL_OK")
</pallas_src>

<mosaic_0001>
module attributes {stable_mosaic.version = 11 : i64} {
  func.func @kernel(%arg0: i32, %arg1: memref<2x32xf32, #tpu.memory_space<vmem>>, %arg2: memref<944x256xf32, #tpu.memory_space<vmem>>, %arg3: memref<2x128xf32, #tpu.memory_space<vmem>>) attributes {dimension_semantics = [#tpu.dimension_semantics<parallel>], iteration_bounds = array<i64: 1>, scalar_prefetch = 0 : i64, scratch_operands = 0 : i64, tpu.core_type = #tpu.core_type<tc>, window_params = [{transform_indices = @transform_0, window_bounds = array<i64: 2, 32>}, {pipeline_mode = #tpu.pipeline_mode<synchronous>, transform_indices = @transform_1, window_bounds = array<i64: 944, 256>}, {transform_indices = @transform_2, window_bounds = array<i64: 2, 128>}]} {
    %c0 = arith.constant 0 : index
    %c0_0 = arith.constant 0 : index
    %0 = vector.load %arg1[%c0, %c0_0] : memref<2x32xf32, #tpu.memory_space<vmem>>, vector<2x32xf32>
    %c0_1 = arith.constant 0 : index
    %c0_2 = arith.constant 0 : index
    %1 = vector.load %arg2[%c0_1, %c0_2] : memref<944x256xf32, #tpu.memory_space<vmem>>, vector<32x168xf32>
    %cst = arith.constant dense<0.000000e+00> : vector<2x168xf32>
    %2 = tpu.matmul %0, %1, %cst {dimension_numbers = #tpu.dot_dimension_numbers<[1], [0], [0], [1], [0, 0, 1, 1], [], []>} : vector<2x32xf32>, vector<32x168xf32>, vector<2x168xf32> -> vector<2x168xf32>
    %c32 = arith.constant 32 : index
    %c0_3 = arith.constant 0 : index
    %3 = vector.load %arg2[%c32, %c0_3] : memref<944x256xf32, #tpu.memory_space<vmem>>, vector<1x168xf32>
    %4 = vector.broadcast %3 : vector<1x168xf32> to vector<2x168xf32>
    %5 = arith.addf %2, %4 : vector<2x168xf32>
    %cst_4 = arith.constant 0.000000e+00 : f32
    %6 = vector.broadcast %cst_4 : f32 to vector<2x168xf32>
    %7 = arith.maximumf %5, %6 : vector<2x168xf32>
    %c40 = arith.constant 40 : index
    %c0_5 = arith.constant 0 : index
    %8 = vector.load %arg2[%c40, %c0_5] : memref<944x256xf32, #tpu.memory_space<vmem>>, vector<168x84xf32>
    %cst_6 = arith.constant dense<0.000000e+00> : vector<2x84xf32>
    %9 = tpu.matmul %7, %8, %cst_6 {dimension_numbers = #tpu.dot_dimension_numbers<[1], [0], [0], [1], [0, 0, 1, 1], [], []>} : vector<2x168xf32>, vector<168x84xf32>, vector<2x84xf32> -> vector<2x84xf32>
    %c208 = arith.constant 208 : index
    %c0_7 = arith.constant 0 : index
    %10 = vector.load %arg2[%c208, %c0_7] : memref<944x256xf32, #tpu.memory_space<vmem>>, vector<168x84xf32>
    %cst_8 = arith.constant dense<0.000000e+00> : vector<2x84xf32>
    %11 = tpu.matmul %7, %10, %cst_8 {dimension_numbers = #tpu.dot_dimension_numbers<[1], [0], [0], [1], [0, 0, 1, 1], [], []>} : vector<2x168xf32>, vector<168x84xf32>, vector<2x84xf32> -> vector<2x84xf32>
    %12 = arith.maximumf %9, %11 : vector<2x84xf32>
    %c376 = arith.constant 376 : index
    %c0_9 = arith.constant 0 : index
    %13 = vector.load %arg2[%c376, %c0_9] : memref<944x256xf32, #tpu.memory_space<vmem>>, vector<84x160xf32>
    %cst_10 = arith.constant dense<0.000000e+00> : vector<2x160xf32>
    %14 = tpu.matmul %12, %13, %cst_10 {dimension_numbers = #tpu.dot_dimension_numbers<[1], [0], [0], [1], [0, 0, 1, 1], [], []>} : vector<2x84xf32>, vector<84x160xf32>, vector<2x160xf32> -> vector<2x160xf32>
    %c464 = arith.constant 464 : index
    %c0_11 = arith.constant 0 : index
    %15 = vector.load %arg2[%c464, %c0_11] : memref<944x256xf32, #tpu.memory_space<vmem>>, vector<1x160xf32>
    %16 = vector.broadcast %15 : vector<1x160xf32> to vector<2x160xf32>
    %17 = arith.addf %14, %16 : vector<2x160xf32>
    %cst_12 = arith.constant 0.000000e+00 : f32
    %18 = vector.broadcast %cst_12 : f32 to vector<2x160xf32>
    %19 = arith.maximumf %17, %18 : vector<2x160xf32>
    %c472 = arith.constant 472 : index
    %c0_13 = arith.constant 0 : index
    %20 = vector.load %arg2[%c472, %c0_13] : memref<944x256xf32, #tpu.memory_space<vmem>>, vector<160x80xf32>
    %cst_14 = arith.constant dense<0.000000e+00> : vector<2x80xf32>
    %21 = tpu.matmul %19, %20, %cst_14 {dimension_numbers = #tpu.dot_dimension_numbers<[1], [0], [0], [1], [0, 0, 1, 1], [], []>} : vector<2x160xf32>, vector<160x80xf32>, vector<2x80xf32> -> vector<2x80xf32>
    %c632 = arith.constant 632 : index
    %c0_15 = arith.constant 0 : index
    %22 = vector.load %arg2[%c632, %c0_15] : memref<944x256xf32, #tpu.memory_space<vmem>>, vector<160x80xf32>
    %cst_16 = arith.constant dense<0.000000e+00> : vector<2x80xf32>
    %23 = tpu.matmul %19, %22, %cst_16 {dimension_numbers = #tpu.dot_dimension_numbers<[1], [0], [0], [1], [0, 0, 1, 1], [], []>} : vector<2x160xf32>, vector<160x80xf32>, vector<2x80xf32> -> vector<2x80xf32>
    %24 = arith.maximumf %21, %23 : vector<2x80xf32>
    %c792 = arith.constant 792 : index
    %c0_17 = arith.constant 0 : index
    %25 = vector.load %arg2[%c792, %c0_17] : memref<944x256xf32, #tpu.memory_space<vmem>>, vector<80x30xf32>
    %cst_18 = arith.constant dense<0.000000e+00> : vector<2x30xf32>
    %26 = tpu.matmul %24, %25, %cst_18 {dimension_numbers = #tpu.dot_dimension_numbers<[1], [0], [0], [1], [0, 0, 1, 1], [], []>} : vector<2x80xf32>, vector<80x30xf32>, vector<2x30xf32> -> vector<2x30xf32>
    %c872 = arith.constant 872 : index
    %c0_19 = arith.constant 0 : index
    %27 = vector.load %arg2[%c872, %c0_19] : memref<944x256xf32, #tpu.memory_space<vmem>>, vector<1x30xf32>
    %28 = vector.broadcast %27 : vector<1x30xf32> to vector<2x30xf32>
    %29 = arith.addf %26, %28 : vector<2x30xf32>
    %cst_20 = arith.constant 0.000000e+00 : f32
    %30 = vector.broadcast %cst_20 : f32 to vector<2x30xf32>
    %31 = arith.maximumf %29, %30 : vector<2x30xf32>
    %c880 = arith.constant 880 : index
    %c0_21 = arith.constant 0 : index
    %32 = vector.load %arg2[%c880, %c0_21] : memref<944x256xf32, #tpu.memory_space<vmem>>, vector<30x10xf32>
    %cst_22 = arith.constant dense<0.000000e+00> : vector<2x10xf32>
    %33 = tpu.matmul %31, %32, %cst_22 {dimension_numbers = #tpu.dot_dimension_numbers<[1], [0], [0], [1], [0, 0, 1, 1], [], []>} : vector<2x30xf32>, vector<30x10xf32>, vector<2x10xf32> -> vector<2x10xf32>
    %c912 = arith.constant 912 : index
    %c0_23 = arith.constant 0 : index
    %34 = vector.load %arg2[%c912, %c0_23] : memref<944x256xf32, #tpu.memory_space<vmem>>, vector<1x10xf32>
    %35 = vector.broadcast %34 : vector<1x10xf32> to vector<2x10xf32>
    %36 = arith.addf %33, %35 : vector<2x10xf32>
    %cst_24 = arith.constant 0.000000e+00 : f32
    %37 = vector.broadcast %cst_24 : f32 to vector<2x10xf32>
    %38 = arith.maximumf %36, %37 : vector<2x10xf32>
    %c920 = arith.constant 920 : index
    %c0_25 = arith.constant 0 : index
    %39 = vector.load %arg2[%c920, %c0_25] : memref<944x256xf32, #tpu.memory_space<vmem>>, vector<10x128xf32>
    %cst_26 = arith.constant dense<0.000000e+00> : vector<2x128xf32>
    %40 = tpu.matmul %38, %39, %cst_26 {dimension_numbers = #tpu.dot_dimension_numbers<[1], [0], [0], [1], [0, 0, 1, 1], [], []>} : vector<2x10xf32>, vector<10x128xf32>, vector<2x128xf32> -> vector<2x128xf32>
    %c936 = arith.constant 936 : index
    %c0_27 = arith.constant 0 : index
    %41 = vector.load %arg2[%c936, %c0_27] : memref<944x256xf32, #tpu.memory_space<vmem>>, vector<1x128xf32>
    %42 = vector.broadcast %41 : vector<1x128xf32> to vector<2x128xf32>
    %43 = arith.addf %40, %42 : vector<2x128xf32>
    %c0_28 = arith.constant 0 : index
    %c0_29 = arith.constant 0 : index
    %44 = vector.load %arg3[%c0_28, %c0_29] : memref<2x128xf32, #tpu.memory_space<vmem>>, vector<2x128xf32>
    tpu.vector_store %arg3[%c0_28, %c0_29], %43 {strides = array<i32>} : memref<2x128xf32, #tpu.memory_space<vmem>>, vector<2x128xf32>,
    return
  }
  func.func @transform_0(%arg0: i32) -> (i32, i32) {
    %c0_i32 = arith.constant 0 : i32
    %c0_i32_0 = arith.constant 0 : i32
    return %arg0, %c0_i32 : i32, i32
  }
  func.func @transform_1(%arg0: i32) -> (i32, i32) {
    %c0_i32 = arith.constant 0 : i32
    %c0_i32_0 = arith.constant 0 : i32
    %c0_i32_1 = arith.constant 0 : i32
    return %c0_i32, %c0_i32_0 : i32, i32
  }
  func.func @transform_2(%arg0: i32) -> (i32, i32) {
    %c0_i32 = arith.constant 0 : i32
    %c0_i32_0 = arith.constant 0 : i32
    return %arg0, %c0_i32 : i32, i32
  }
}

</mosaic_0001>

<llo_original>
// kernel: forward.1
$region0: #{forward.1}
  #allocation0 [shape = 'u32[]', space=smem, size = 0x4, offset = 0x4, fixed_abs, tag = 'smem constant byte address 0x4 - core index']
  #allocation1 [shape = 'u32[144,128]{1,0:T(1,128)}', space=vmem, size = 0x12000, scoped, tag = 'internal scratch']
  %s0 = inlined_call_operand.vmem [shape: f32[2,32], index: 0, kind: input, shape index: {}]
  %s1 = inlined_call_operand.hbm [shape: f32[944,256], index: 1, kind: input, shape index: {}]
  %s2 = inlined_call_operand.hbm [shape: f32[2,128], index: 2, kind: output, shape index: {}]
  %s3 = sld [smem:[#allocation0]]
  $region22: #{forward.1} parent=0
    _
  %s5 = ssub.s32 1, %s3
  %s6 = scalar_select 0, %s5, %s3
  $region1: #{forward.1} parent=0
    #allocation2 [shape = 'u8[966656]{0}', space=vmem, size = 0xec000, scoped, tag = 'input window, operand 1, single buffered']
    #allocation3 [shape = 's32[1]{0}', space=sflag, size = 0x4, scoped, tag = 'scoped memory for forward.1']
    #allocation4 [shape = 's32[1]{0}', space=sflag, size = 0x4, scoped, tag = 'scoped memory for forward.1']
    #allocation5 [shape = 'u8[1024]{0}', space=vmem, size = 0x400, scoped, tag = 'output window, operand 0, single buffered']
    %7 = vsyncpa [#allocation3], 0
    %8 = vsyncpa [#allocation4], 0
    // Predicated region
    $region2: #{forward.1} parent=1 // pred_check
      _
    $region3: #{forward.1} parent=1 // pred_check_branch
      %10 = sbr.rel (0) target = $region5
    $region4: #{forward.1} parent=1 // pred_region
      _
    $region5: #{forward.1} parent=1 // pred_fallthru
      _
    // Predicated region
    $region6: #{forward.1} parent=1 // pred_check
      _
    $region7: #{forward.1} parent=1 // pred_check_branch
      %12 = sbr.rel (0) target = $region9
    $region8: #{forward.1} parent=1 // pred_region
      %s14 = ssub.s32 30208, 30208
      %15 = vsyncadd [#allocation3], %s14
      %s16 = sshll.u32 [#allocation2], 4
      %s17 = int_to_ptr.vmem [resolvable:$true] %s16
      %22 = dma.hbm_to_vmem [thread:$0]  %s1, 30208, %s17, [#allocation3], 256, 256, 16
    $region9: #{forward.1} parent=1 // pred_fallthru
      _
    // Predicated region
    $region10: #{forward.1} parent=1 // pred_check
      _
    $region11: #{forward.1} parent=1 // pred_check_branch
      %24 = sbr.rel (0) target = $region13
    $region12: #{forward.1} parent=1 // pred_region
      %25 = dma.done [#allocation3], 30208
    $region13: #{forward.1} parent=1 // pred_fallthru
      _
    %v26 = vld [vmem:[%s0] sm:$0x3]
    %v27 = vld [vmem:[#allocation2] sm:$0xff]
    %v28 = vld [vmem:[#allocation2 + $0x8] sm:$0xff]
    %v29 = vld [vmem:[#allocation2 + $0x10] sm:$0xff]
    %v30 = vld [vmem:[#allocation2 + $0x18] sm:$0xff]
    %v31 = vld [vmem:[#allocation2 + $0x20] sm:$0xff]
    %v32 = vld [vmem:[#allocation2 + $0x28] sm:$0xff]
    %v33 = vld [vmem:[#allocation2 + $0x30] sm:$0xff]
    %v34 = vld [vmem:[#allocation2 + $0x38] sm:$0xff]
    %s35 = scalar_lea.vmem [#allocation2], 64
    %v36 = vld [vmem:[%s35] ss:$8 sm:$0x3]
    %v38 = vlaneseq
    %v39 = vshrl.u32 %v38, 7
    %v40 = vsub.s32 0, %v39
    %v41 = vrot.slane %v36, %v40
    %v42 = vlaneseq
    %v43 = vshrl.u32 %v42, 7
    %v44 = vsub.s32 1, %v43
    %v45 = vrot.slane %v36, %v44
    %vm48 = vcmask 261120
    %v50 = vsel %vm48, %v26, 0
    %52 = vmatprep.subr.mxu0 %v28
    %53 = vmatpush1.msra.mxu0 %v27
    %54 = vmatprep.subr.mxu0 %v30
    %55 = vmatpush1.msra.mxu0 %v29
    %56 = vmatprep.subr.mxu0 %v32
    %57 = vmatpush1.msra.mxu0 %v31
    %58 = vmatprep.subr.mxu0 %v34
    %59 = vmatpush1.msra.mxu0 %v33
    %60 = vmatprep.subr.mxu0 0.0
    %61 = vmatpush1.msra.mxu0 0.0
    %62 = vmatprep.subr.mxu0 0.0
    %63 = vmatpush1.msra.mxu0 0.0
    %64 = vmatprep.subr.mxu0 0.0
    %65 = vmatpush1.msra.mxu0 0.0
    %66 = vmatprep.subr.mxu0 0.0
    %67 = vmatpush1.msra.mxu0 0.0
    %68 = vmatprep.subr.mxu0 0.0
    %69 = vmatpush1.msra.mxu0 0.0
    %70 = vmatprep.subr.mxu0 0.0
    %71 = vmatpush1.msra.mxu0 0.0
    %72 = vmatprep.subr.mxu0 0.0
    %73 = vmatpush1.msra.mxu0 0.0
    %74 = vmatprep.subr.mxu0 0.0
    %75 = vmatpush1.msra.mxu0 0.0
    %76 = vmatprep.subr.mxu0 0.0
    %77 = vmatpush1.msra.mxu0 0.0
    %78 = vmatprep.subr.mxu0 0.0
    %79 = vmatpush1.msra.mxu0 0.0
    %80 = vmatprep.subr.mxu0 0.0
    %81 = vmatpush1.msra.mxu0 0.0
    %82 = vmatprep.subr.mxu0 0.0
    %83 = vmatpush1.msra.mxu0 0.0
    %84 = vmatprep.subr.mxu0 0.0
    %85 = vmatpush1.msra.mxu0 0.0
    %86 = vmatprep.subr.mxu0 0.0
    %87 = vmatpush1.msra.mxu0 0.0
    %88 = vmatprep.subr.mxu0 0.0
    %89 = vmatpush1.msra.mxu0 0.0
    %90 = vmatprep.subr.mxu0 0.0
    %91 = vmatpush1.msra.mxu0 0.0
    %92 = vmatprep.subr.mxu0 0.0
    %93 = vmatpush1.msra.mxu0 0.0
    %94 = vmatprep.subr.mxu0 0.0
    %95 = vmatpush1.msra.mxu0 0.0
    %96 = vmatprep.subr.mxu0 0.0
    %97 = vmatpush1.msra.mxu0 0.0
    %98 = vmatprep.subr.mxu0 0.0
    %99 = vmatpush1.msra.mxu0 0.0
    %100 = vmatprep.subr.mxu0 0.0
    %101 = vmatpush1.msra.mxu0 0.0
    %102 = vmatprep.subr.mxu0 0.0
    %103 = vmatpush1.msra.mxu0 0.0
    %104 = vmatprep.subr.mxu0 0.0
    %105 = vmatpush1.msra.mxu0 0.0
    %106 = vmatprep.subr.mxu0 0.0
    %107 = vmatpush1.msra.mxu0 0.0
    %108 = vmatprep.subr.mxu0 0.0
    %109 = vmatpush1.msra.mxu0 0.0
    %110 = vmatprep.subr.mxu0 0.0
    %111 = vmatpush1.msra.mxu0 0.0
    %112 = vmatprep.subr.mxu0 0.0
    %113 = vmatpush1.msra.mxu0 0.0
    %114 = vmatprep.subr.mxu0 0.0
    %115 = vmatpush1.msra.mxu0 0.0
    %116 = vmatprep.mubr.f32.mxu0 0.0
    %117 = vmatmul.mubr.f32.gmra.mrb[0].mxu0 %v50
    %v118 = vpop.f32.mrb[0].mxu0
    %v119 = vadd.f32 %v41, %v118
    %v120 = vpop.f32.mrb[0].mxu0
    %v121 = vadd.f32 %v45, %v120
    %122 = vdwg.mxu0
    %v123 = vmax.f32 %v119, 0.0
    %v124 = vmax.f32 %v121, 0.0
    %v125 = vld [vmem:[#allocation2 + $0x50] sm:$0xff]
    %v126 = vld [vmem:[#allocation2 + $0x60] sm:$0xff]
    %v127 = vld [vmem:[#allocation2 + $0x70] sm:$0xff]
    %v128 = vld [vmem:[#allocation2 + $0x80] sm:$0xff]
    %v129 = vld [vmem:[#allocation2 + $0x90] sm:$0xff]
    %v130 = vld [vmem:[#allocation2 + $0xa0] sm:$0xff]
    %v131 = vld [vmem:[#allocation2 + $0xb0] sm:$0xff]
    %v132 = vld [vmem:[#allocation2 + $0xc0] sm:$0xff]
    %v133 = vld [vmem:[#allocation2 + $0xd0] sm:$0xff]
    %v134 = vld [vmem:[#allocation2 + $0xe0] sm:$0xff]
    %v135 = vld [vmem:[#allocation2 + $0xf0] sm:$0xff]
    %v136 = vld [vmem:[#allocation2 + $0x100] sm:$0xff]
    %v137 = vld [vmem:[#allocation2 + $0x110] sm:$0xff]
    %v138 = vld [vmem:[#allocation2 + $0x120] sm:$0xff]
    %v139 = vld [vmem:[#allocation2 + $0x130] sm:$0xff]
    %v140 = vld [vmem:[#allocation2 + $0x140] sm:$0xff]
    %v141 = vld [vmem:[#allocation2 + $0x150] sm:$0xff]
    %v142 = vld [vmem:[#allocation2 + $0x160] sm:$0xff]
    %v143 = vld [vmem:[#allocation2 + $0x170] sm:$0xff]
    %v144 = vld [vmem:[#allocation2 + $0x180] sm:$0xff]
    %v145 = vld [vmem:[#allocation2 + $0x190] sm:$0xff]
    %vm146 = vcmask 326656
    %v148 = vsel %vm146, %v124, 0
    %150 = vmatprep.subr.mxu0 0.0
    %151 = vmatpush1.msra.mxu0 %v125
    %152 = vmatprep.subr.mxu0 0.0
    %153 = vmatpush1.msra.mxu0 %v126
    %154 = vmatprep.subr.mxu0 0.0
    %155 = vmatpush1.msra.mxu0 %v127
    %156 = vmatprep.subr.mxu0 0.0
    %157 = vmatpush1.msra.mxu0 %v128
    %158 = vmatprep.subr.mxu0 0.0
    %159 = vmatpush1.msra.mxu0 %v129
    %160 = vmatprep.subr.mxu0 0.0
    %161 = vmatpush1.msra.mxu0 %v130
    %162 = vmatprep.subr.mxu0 0.0
    %163 = vmatpush1.msra.mxu0 %v131
    %164 = vmatprep.subr.mxu0 0.0
    %165 = vmatpush1.msra.mxu0 %v132
    %166 = vmatprep.subr.mxu0 0.0
    %167 = vmatpush1.msra.mxu0 %v133
    %168 = vmatprep.subr.mxu0 0.0
    %169 = vmatpush1.msra.mxu0 %v134
    %170 = vmatprep.subr.mxu0 0.0
    %171 = vmatpush1.msra.mxu0 %v135
    %172 = vmatprep.subr.mxu0 0.0
    %173 = vmatpush1.msra.mxu0 %v136
    %174 = vmatprep.subr.mxu0 0.0
    %175 = vmatpush1.msra.mxu0 %v137
    %176 = vmatprep.subr.mxu0 0.0
    %177 = vmatpush1.msra.mxu0 %v138
    %178 = vmatprep.subr.mxu0 0.0
    %179 = vmatpush1.msra.mxu0 %v139
    %180 = vmatprep.subr.mxu0 0.0
    %181 = vmatpush1.msra.mxu0 %v140
    %182 = vmatprep.subr.mxu0 0.0
    %183 = vmatpush1.msra.mxu0 %v141
    %184 = vmatprep.subr.mxu0 0.0
    %185 = vmatpush1.msra.mxu0 %v142
    %186 = vmatprep.subr.mxu0 0.0
    %187 = vmatpush1.msra.mxu0 %v143
    %188 = vmatprep.subr.mxu0 0.0
    %189 = vmatpush1.msra.mxu0 %v144
    %190 = vmatprep.subr.mxu0 0.0
    %191 = vmatpush1.msra.mxu0 %v145
    %192 = vmatprep.subr.mxu0 0.0
    %193 = vmatpush1.msra.mxu0 0.0
    %194 = vmatprep.subr.mxu0 0.0
    %195 = vmatpush1.msra.mxu0 0.0
    %196 = vmatprep.subr.mxu0 0.0
    %197 = vmatpush1.msra.mxu0 0.0
    %198 = vmatprep.subr.mxu0 0.0
    %199 = vmatpush1.msra.mxu0 0.0
    %200 = vmatprep.subr.mxu0 0.0
    %201 = vmatpush1.msra.mxu0 0.0
    %202 = vmatprep.subr.mxu0 0.0
    %203 = vmatpush1.msra.mxu0 0.0
    %204 = vmatprep.subr.mxu0 0.0
    %205 = vmatpush1.msra.mxu0 0.0
    %206 = vmatprep.subr.mxu0 0.0
    %207 = vmatpush1.msra.mxu0 0.0
    %208 = vmatprep.subr.mxu0 0.0
    %209 = vmatpush1.msra.mxu0 0.0
    %210 = vmatprep.subr.mxu0 0.0
    %211 = vmatpush1.msra.mxu0 0.0
    %212 = vmatprep.subr.mxu0 0.0
    %213 = vmatpush1.msra.mxu0 0.0
    %214 = vmatprep.mubr.f32.mxu0 %v148
    %215 = vmatmul.mubr.f32.gmra.mrb[0].mxu0 %v123
    %v216 = vpop.f32.mrb[0].mxu0
    %v217 = vadd.f32 0.0, %v216
    %v218 = vpop.f32.mrb[0].mxu0
    %219 = vdwg.mxu0
    %v220 = vld [vmem:[#allocation2 + $0x1a0] sm:$0xff]
    %v221 = vld [vmem:[#allocation2 + $0x1b0] sm:$0xff]
    %v222 = vld [vmem:[#allocation2 + $0x1c0] sm:$0xff]
    %v223 = vld [vmem:[#allocation2 + $0x1d0] sm:$0xff]
    %v224 = vld [vmem:[#allocation2 + $0x1e0] sm:$0xff]
    %v225 = vld [vmem:[#allocation2 + $0x1f0] sm:$0xff]
    %v226 = vld [vmem:[#allocation2 + $0x200] sm:$0xff]
    %v227 = vld [vmem:[#allocation2 + $0x210] sm:$0xff]
    %v228 = vld [vmem:[#allocation2 + $0x220] sm:$0xff]
    %v229 = vld [vmem:[#allocation2 + $0x230] sm:$0xff]
    %v230 = vld [vmem:[#allocation2 + $0x240] sm:$0xff]
    %v231 = vld [vmem:[#allocation2 + $0x250] sm:$0xff]
    %v232 = vld [vmem:[#allocation2 + $0x260] sm:$0xff]
    %v233 = vld [vmem:[#allocation2 + $0x270] sm:$0xff]
    %v234 = vld [vmem:[#allocation2 + $0x280] sm:$0xff]
    %v235 = vld [vmem:[#allocation2 + $0x290] sm:$0xff]
    %v236 = vld [vmem:[#allocation2 + $0x2a0] sm:$0xff]
    %v237 = vld [vmem:[#allocation2 + $0x2b0] sm:$0xff]
    %v238 = vld [vmem:[#allocation2 + $0x2c0] sm:$0xff]
    %v239 = vld [vmem:[#allocation2 + $0x2d0] sm:$0xff]
    %v240 = vld [vmem:[#allocation2 + $0x2e0] sm:$0xff]
    %241 = vmatprep.subr.mxu0 0.0
    %242 = vmatpush1.msra.mxu0 %v220
    %243 = vmatprep.subr.mxu0 0.0
    %244 = vmatpush1.msra.mxu0 %v221
    %245 = vmatprep.subr.mxu0 0.0
    %246 = vmatpush1.msra.mxu0 %v222
    %247 = vmatprep.subr.mxu0 0.0
    %248 = vmatpush1.msra.mxu0 %v223
    %249 = vmatprep.subr.mxu0 0.0
    %250 = vmatpush1.msra.mxu0 %v224
    %251 = vmatprep.subr.mxu0 0.0
    %252 = vmatpush1.msra.mxu0 %v225
    %253 = vmatprep.subr.mxu0 0.0
    %254 = vmatpush1.msra.mxu0 %v226
    %255 = vmatprep.subr.mxu0 0.0
    %256 = vmatpush1.msra.mxu0 %v227
    %257 = vmatprep.subr.mxu0 0.0
    %258 = vmatpush1.msra.mxu0 %v228
    %259 = vmatprep.subr.mxu0 0.0
    %260 = vmatpush1.msra.mxu0 %v229
    %261 = vmatprep.subr.mxu0 0.0
    %262 = vmatpush1.msra.mxu0 %v230
    %263 = vmatprep.subr.mxu0 0.0
    %264 = vmatpush1.msra.mxu0 %v231
    %265 = vmatprep.subr.mxu0 0.0
    %266 = vmatpush1.msra.mxu0 %v232
    %267 = vmatprep.subr.mxu0 0.0
    %268 = vmatpush1.msra.mxu0 %v233
    %269 = vmatprep.subr.mxu0 0.0
    %270 = vmatpush1.msra.mxu0 %v234
    %271 = vmatprep.subr.mxu0 0.0
    %272 = vmatpush1.msra.mxu0 %v235
    %273 = vmatprep.subr.mxu0 0.0
    %274 = vmatpush1.msra.mxu0 %v236
    %275 = vmatprep.subr.mxu0 0.0
    %276 = vmatpush1.msra.mxu0 %v237
    %277 = vmatprep.subr.mxu0 0.0
    %278 = vmatpush1.msra.mxu0 %v238
    %279 = vmatprep.subr.mxu0 0.0
    %280 = vmatpush1.msra.mxu0 %v239
    %281 = vmatprep.subr.mxu0 0.0
    %282 = vmatpush1.msra.mxu0 %v240
    %283 = vmatprep.subr.mxu0 0.0
    %284 = vmatpush1.msra.mxu0 0.0
    %285 = vmatprep.subr.mxu0 0.0
    %286 = vmatpush1.msra.mxu0 0.0
    %287 = vmatprep.subr.mxu0 0.0
    %288 = vmatpush1.msra.mxu0 0.0
    %289 = vmatprep.subr.mxu0 0.0
    %290 = vmatpush1.msra.mxu0 0.0
    %291 = vmatprep.subr.mxu0 0.0
    %292 = vmatpush1.msra.mxu0 0.0
    %293 = vmatprep.subr.mxu0 0.0
    %294 = vmatpush1.msra.mxu0 0.0
    %295 = vmatprep.subr.mxu0 0.0
    %296 = vmatpush1.msra.mxu0 0.0
    %297 = vmatprep.subr.mxu0 0.0
    %298 = vmatpush1.msra.mxu0 0.0
    %299 = vmatprep.subr.mxu0 0.0
    %300 = vmatpush1.msra.mxu0 0.0
    %301 = vmatprep.subr.mxu0 0.0
    %302 = vmatpush1.msra.mxu0 0.0
    %303 = vmatprep.subr.mxu0 0.0
    %304 = vmatpush1.msra.mxu0 0.0
    %305 = vmatprep.mubr.f32.mxu0 %v148
    %306 = vmatmul.mubr.f32.gmra.mrb[0].mxu0 %v123
    %v307 = vpop.f32.mrb[0].mxu0
    %v308 = vadd.f32 0.0, %v307
    %v309 = vpop.f32.mrb[0].mxu0
    %310 = vdwg.mxu0
    %v311 = vmax.f32 %v217, %v308
    %v312 = vld [vmem:[#allocation2 + $0x2f0] sm:$0xff]
    %v313 = vld [vmem:[#allocation2 + $0x2f8] sm:$0xff]
    %v314 = vld [vmem:[#allocation2 + $0x300] sm:$0xff]
    %v315 = vld [vmem:[#allocation2 + $0x308] sm:$0xff]
    %v316 = vld [vmem:[#allocation2 + $0x310] sm:$0xff]
    %v317 = vld [vmem:[#allocation2 + $0x318] sm:$0xff]
    %v318 = vld [vmem:[#allocation2 + $0x320] sm:$0xff]
    %v319 = vld [vmem:[#allocation2 + $0x328] sm:$0xff]
    %v320 = vld [vmem:[#allocation2 + $0x330] sm:$0xff]
    %v321 = vld [vmem:[#allocation2 + $0x338] sm:$0xff]
    %v322 = vld [vmem:[#allocation2 + $0x340] sm:$0xff]
    %v323 = vld [vmem:[#allocation2 + $0x348] sm:$0xff]
    %v324 = vld [vmem:[#allocation2 + $0x350] sm:$0xff]
    %v325 = vld [vmem:[#allocation2 + $0x358] sm:$0xff]
    %v326 = vld [vmem:[#allocation2 + $0x360] sm:$0xff]
    %v327 = vld [vmem:[#allocation2 + $0x368] sm:$0xff]
    %v328 = vld [vmem:[#allocation2 + $0x370] sm:$0xff]
    %v329 = vld [vmem:[#allocation2 + $0x378] sm:$0xff]
    %v330 = vld [vmem:[#allocation2 + $0x380] sm:$0xff]
    %v331 = vld [vmem:[#allocation2 + $0x388] sm:$0xff]
    %v332 = vld [vmem:[#allocation2 + $0x390] sm:$0xf]
    %v333 = vld [vmem:[#allocation2 + $0x398] sm:$0xf]
    %s334 = scalar_lea.vmem [#allocation2], 928
    %v335 = vld [vmem:[%s334] ss:$8 sm:$0x3]
    %v337 = vlaneseq
    %v338 = vshrl.u32 %v337, 7
    %v339 = vsub.s32 0, %v338
    %v340 = vrot.slane %v335, %v339
    %v341 = vlaneseq
    %v342 = vshrl.u32 %v341, 7
    %v343 = vsub.s32 1, %v342
    %v344 = vrot.slane %v335, %v343
    %vm347 = vcmask 687104
    %v349 = vsel %vm347, %v311, 0
    %vm351 = vcmask 1043456
    %v353 = vsel %vm351, %v332, 0
    %v356 = vsel %vm351, %v333, 0
    %358 = vmatprep.subr.mxu0 %v313
    %359 = vmatpush1.msra.mxu0 %v312
    %360 = vmatprep.subr.mxu0 %v315
    %361 = vmatpush1.msra.mxu0 %v314
    %362 = vmatprep.subr.mxu0 %v317
    %363 = vmatpush1.msra.mxu0 %v316
    %364 = vmatprep.subr.mxu0 %v319
    %365 = vmatpush1.msra.mxu0 %v318
    %366 = vmatprep.subr.mxu0 %v321
    %367 = vmatpush1.msra.mxu0 %v320
    %368 = vmatprep.subr.mxu0 %v323
    %369 = vmatpush1.msra.mxu0 %v322
    %370 = vmatprep.subr.mxu0 %v325
    %371 = vmatpush1.msra.mxu0 %v324
    %372 = vmatprep.subr.mxu0 %v327
    %373 = vmatpush1.msra.mxu0 %v326
    %374 = vmatprep.subr.mxu0 %v329
    %375 = vmatpush1.msra.mxu0 %v328
    %376 = vmatprep.subr.mxu0 %v331
    %377 = vmatpush1.msra.mxu0 %v330
    %378 = vmatprep.subr.mxu0 %v356
    %379 = vmatpush1.msra.mxu0 %v353
    %380 = vmatprep.subr.mxu0 0.0
    %381 = vmatpush1.msra.mxu0 0.0
    %382 = vmatprep.subr.mxu0 0.0
    %383 = vmatpush1.msra.mxu0 0.0
    %384 = vmatprep.subr.mxu0 0.0
    %385 = vmatpush1.msra.mxu0 0.0
    %386 = vmatprep.subr.mxu0 0.0
    %387 = vmatpush1.msra.mxu0 0.0
    %388 = vmatprep.subr.mxu0 0.0
    %389 = vmatpush1.msra.mxu0 0.0
    %390 = vmatprep.subr.mxu0 0.0
    %391 = vmatpush1.msra.mxu0 0.0
    %392 = vmatprep.subr.mxu0 0.0
    %393 = vmatpush1.msra.mxu0 0.0
    %394 = vmatprep.subr.mxu0 0.0
    %395 = vmatpush1.msra.mxu0 0.0
    %396 = vmatprep.subr.mxu0 0.0
    %397 = vmatpush1.msra.mxu0 0.0
    %398 = vmatprep.subr.mxu0 0.0
    %399 = vmatpush1.msra.mxu0 0.0
    %400 = vmatprep.subr.mxu0 0.0
    %401 = vmatpush1.msra.mxu0 0.0
    %402 = vmatprep.subr.mxu0 0.0
    %403 = vmatpush1.msra.mxu0 0.0
    %404 = vmatprep.subr.mxu0 0.0
    %405 = vmatpush1.msra.mxu0 0.0
    %406 = vmatprep.subr.mxu0 0.0
    %407 = vmatpush1.msra.mxu0 0.0
    %408 = vmatprep.subr.mxu0 0.0
    %409 = vmatpush1.msra.mxu0 0.0
    %410 = vmatprep.subr.mxu0 0.0
    %411 = vmatpush1.msra.mxu0 0.0
    %412 = vmatprep.subr.mxu0 0.0
    %413 = vmatpush1.msra.mxu0 0.0
    %414 = vmatprep.subr.mxu0 0.0
    %415 = vmatpush1.msra.mxu0 0.0
    %416 = vmatprep.subr.mxu0 0.0
    %417 = vmatpush1.msra.mxu0 0.0
    %418 = vmatprep.subr.mxu0 0.0
    %419 = vmatpush1.msra.mxu0 0.0
    %420 = vmatprep.subr.mxu0 0.0
    %421 = vmatpush1.msra.mxu0 0.0
    %422 = vmatprep.mubr.f32.mxu0 0.0
    %423 = vmatmul.mubr.f32.gmra.mrb[0].mxu0 %v349
    %v424 = vpop.f32.mrb[0].mxu0
    %v425 = vadd.f32 %v340, %v424
    %v426 = vpop.f32.mrb[0].mxu0
    %v427 = vadd.f32 %v344, %v426
    %428 = vdwg.mxu0
    %v429 = vmax.f32 %v425, 0.0
    %v430 = vmax.f32 %v427, 0.0
    %v431 = vld [vmem:[#allocation2 + $0x3b0] sm:$0xff]
    %v432 = vld [vmem:[#allocation2 + $0x3c0] sm:$0xff]
    %v433 = vld [vmem:[#allocation2 + $0x3d0] sm:$0xff]
    %v434 = vld [vmem:[#allocation2 + $0x3e0] sm:$0xff]
    %v435 = vld [vmem:[#allocation2 + $0x3f0] sm:$0xff]
    %v436 = vld [vmem:[#allocation2 + $0x400] sm:$0xff]
    %v437 = vld [vmem:[#allocation2 + $0x410] sm:$0xff]
    %v438 = vld [vmem:[#allocation2 + $0x420] sm:$0xff]
    %v439 = vld [vmem:[#allocation2 + $0x430] sm:$0xff]
    %v440 = vld [vmem:[#allocation2 + $0x440] sm:$0xff]
    %v441 = vld [vmem:[#allocation2 + $0x450] sm:$0xff]
    %v442 = vld [vmem:[#allocation2 + $0x460] sm:$0xff]
    %v443 = vld [vmem:[#allocation2 + $0x470] sm:$0xff]
    %v444 = vld [vmem:[#allocation2 + $0x480] sm:$0xff]
    %v445 = vld [vmem:[#allocation2 + $0x490] sm:$0xff]
    %v446 = vld [vmem:[#allocation2 + $0x4a0] sm:$0xff]
    %v447 = vld [vmem:[#allocation2 + $0x4b0] sm:$0xff]
    %v448 = vld [vmem:[#allocation2 + $0x4c0] sm:$0xff]
    %v449 = vld [vmem:[#allocation2 + $0x4d0] sm:$0xff]
    %v450 = vld [vmem:[#allocation2 + $0x4e0] sm:$0xff]
    %v452 = vsel %vm48, %v430, 0
    %454 = vmatprep.subr.mxu0 0.0
    %455 = vmatpush1.msra.mxu0 %v431
    %456 = vmatprep.subr.mxu0 0.0
    %457 = vmatpush1.msra.mxu0 %v432
    %458 = vmatprep.subr.mxu0 0.0
    %459 = vmatpush1.msra.mxu0 %v433
    %460 = vmatprep.subr.mxu0 0.0
    %461 = vmatpush1.msra.mxu0 %v434
    %462 = vmatprep.subr.mxu0 0.0
    %463 = vmatpush1.msra.mxu0 %v435
    %464 = vmatprep.subr.mxu0 0.0
    %465 = vmatpush1.msra.mxu0 %v436
    %466 = vmatprep.subr.mxu0 0.0
    %467 = vmatpush1.msra.mxu0 %v437
    %468 = vmatprep.subr.mxu0 0.0
    %469 = vmatpush1.msra.mxu0 %v438
    %470 = vmatprep.subr.mxu0 0.0
    %471 = vmatpush1.msra.mxu0 %v439
    %472 = vmatprep.subr.mxu0 0.0
    %473 = vmatpush1.msra.mxu0 %v440
    %474 = vmatprep.subr.mxu0 0.0
    %475 = vmatpush1.msra.mxu0 %v441
    %476 = vmatprep.subr.mxu0 0.0
    %477 = vmatpush1.msra.mxu0 %v442
    %478 = vmatprep.subr.mxu0 0.0
    %479 = vmatpush1.msra.mxu0 %v443
    %480 = vmatprep.subr.mxu0 0.0
    %481 = vmatpush1.msra.mxu0 %v444
    %482 = vmatprep.subr.mxu0 0.0
    %483 = vmatpush1.msra.mxu0 %v445
    %484 = vmatprep.subr.mxu0 0.0
    %485 = vmatpush1.msra.mxu0 %v446
    %486 = vmatprep.subr.mxu0 0.0
    %487 = vmatpush1.msra.mxu0 %v447
    %488 = vmatprep.subr.mxu0 0.0
    %489 = vmatpush1.msra.mxu0 %v448
    %490 = vmatprep.subr.mxu0 0.0
    %491 = vmatpush1.msra.mxu0 %v449
    %492 = vmatprep.subr.mxu0 0.0
    %493 = vmatpush1.msra.mxu0 %v450
    %494 = vmatprep.subr.mxu0 0.0
    %495 = vmatpush1.msra.mxu0 0.0
    %496 = vmatprep.subr.mxu0 0.0
    %497 = vmatpush1.msra.mxu0 0.0
    %498 = vmatprep.subr.mxu0 0.0
    %499 = vmatpush1.msra.mxu0 0.0
    %500 = vmatprep.subr.mxu0 0.0
    %501 = vmatpush1.msra.mxu0 0.0
    %502 = vmatprep.subr.mxu0 0.0
    %503 = vmatpush1.msra.mxu0 0.0
    %504 = vmatprep.subr.mxu0 0.0
    %505 = vmatpush1.msra.mxu0 0.0
    %506 = vmatprep.subr.mxu0 0.0
    %507 = vmatpush1.msra.mxu0 0.0
    %508 = vmatprep.subr.mxu0 0.0
    %509 = vmatpush1.msra.mxu0 0.0
    %510 = vmatprep.subr.mxu0 0.0
    %511 = vmatpush1.msra.mxu0 0.0
    %512 = vmatprep.subr.mxu0 0.0
    %513 = vmatpush1.msra.mxu0 0.0
    %514 = vmatprep.subr.mxu0 0.0
    %515 = vmatpush1.msra.mxu0 0.0
    %516 = vmatprep.subr.mxu0 0.0
    %517 = vmatpush1.msra.mxu0 0.0
    %518 = vmatprep.mubr.f32.mxu0 %v452
    %519 = vmatmul.mubr.f32.gmra.mrb[0].mxu0 %v429
    %v520 = vpop.f32.mrb[0].mxu0
    %v521 = vadd.f32 0.0, %v520
    %v522 = vpop.f32.mrb[0].mxu0
    %523 = vdwg.mxu0
    %v524 = vld [vmem:[#allocation2 + $0x4f0] sm:$0xff]
    %v525 = vld [vmem:[#allocation2 + $0x500] sm:$0xff]
    %v526 = vld [vmem:[#allocation2 + $0x510] sm:$0xff]
    %v527 = vld [vmem:[#allocation2 + $0x520] sm:$0xff]
    %v528 = vld [vmem:[#allocation2 + $0x530] sm:$0xff]
    %v529 = vld [vmem:[#allocation2 + $0x540] sm:$0xff]
    %v530 = vld [vmem:[#allocation2 + $0x550] sm:$0xff]
    %v531 = vld [vmem:[#allocation2 + $0x560] sm:$0xff]
    %v532 = vld [vmem:[#allocation2 + $0x570] sm:$0xff]
    %v533 = vld [vmem:[#allocation2 + $0x580] sm:$0xff]
    %v534 = vld [vmem:[#allocation2 + $0x590] sm:$0xff]
    %v535 = vld [vmem:[#allocation2 + $0x5a0] sm:$0xff]
    %v536 = vld [vmem:[#allocation2 + $0x5b0] sm:$0xff]
    %v537 = vld [vmem:[#allocation2 + $0x5c0] sm:$0xff]
    %v538 = vld [vmem:[#allocation2 + $0x5d0] sm:$0xff]
    %v539 = vld [vmem:[#allocation2 + $0x5e0] sm:$0xff]
    %v540 = vld [vmem:[#allocation2 + $0x5f0] sm:$0xff]
    %v541 = vld [vmem:[#allocation2 + $0x600] sm:$0xff]
    %v542 = vld [vmem:[#allocation2 + $0x610] sm:$0xff]
    %v543 = vld [vmem:[#allocation2 + $0x620] sm:$0xff]
    %544 = vmatprep.subr.mxu0 0.0
    %545 = vmatpush1.msra.mxu0 %v524
    %546 = vmatprep.subr.mxu0 0.0
    %547 = vmatpush1.msra.mxu0 %v525
    %548 = vmatprep.subr.mxu0 0.0
    %549 = vmatpush1.msra.mxu0 %v526
    %550 = vmatprep.subr.mxu0 0.0
    %551 = vmatpush1.msra.mxu0 %v527
    %552 = vmatprep.subr.mxu0 0.0
    %553 = vmatpush1.msra.mxu0 %v528
    %554 = vmatprep.subr.mxu0 0.0
    %555 = vmatpush1.msra.mxu0 %v529
    %556 = vmatprep.subr.mxu0 0.0
    %557 = vmatpush1.msra.mxu0 %v530
    %558 = vmatprep.subr.mxu0 0.0
    %559 = vmatpush1.msra.mxu0 %v531
    %560 = vmatprep.subr.mxu0 0.0
    %561 = vmatpush1.msra.mxu0 %v532
    %562 = vmatprep.subr.mxu0 0.0
    %563 = vmatpush1.msra.mxu0 %v533
    %564 = vmatprep.subr.mxu0 0.0
    %565 = vmatpush1.msra.mxu0 %v534
    %566 = vmatprep.subr.mxu0 0.0
    %567 = vmatpush1.msra.mxu0 %v535
    %568 = vmatprep.subr.mxu0 0.0
    %569 = vmatpush1.msra.mxu0 %v536
    %570 = vmatprep.subr.mxu0 0.0
    %571 = vmatpush1.msra.mxu0 %v537
    %572 = vmatprep.subr.mxu0 0.0
    %573 = vmatpush1.msra.mxu0 %v538
    %574 = vmatprep.subr.mxu0 0.0
    %575 = vmatpush1.msra.mxu0 %v539
    %576 = vmatprep.subr.mxu0 0.0
    %577 = vmatpush1.msra.mxu0 %v540
    %578 = vmatprep.subr.mxu0 0.0
    %579 = vmatpush1.msra.mxu0 %v541
    %580 = vmatprep.subr.mxu0 0.0
    %581 = vmatpush1.msra.mxu0 %v542
    %582 = vmatprep.subr.mxu0 0.0
    %583 = vmatpush1.msra.mxu0 %v543
    %584 = vmatprep.subr.mxu0 0.0
    %585 = vmatpush1.msra.mxu0 0.0
    %586 = vmatprep.subr.mxu0 0.0
    %587 = vmatpush1.msra.mxu0 0.0
    %588 = vmatprep.subr.mxu0 0.0
    %589 = vmatpush1.msra.mxu0 0.0
    %590 = vmatprep.subr.mxu0 0.0
    %591 = vmatpush1.msra.mxu0 0.0
    %592 = vmatprep.subr.mxu0 0.0
    %593 = vmatpush1.msra.mxu0 0.0
    %594 = vmatprep.subr.mxu0 0.0
    %595 = vmatpush1.msra.mxu0 0.0
    %596 = vmatprep.subr.mxu0 0.0
    %597 = vmatpush1.msra.mxu0 0.0
    %598 = vmatprep.subr.mxu0 0.0
    %599 = vmatpush1.msra.mxu0 0.0
    %600 = vmatprep.subr.mxu0 0.0
    %601 = vmatpush1.msra.mxu0 0.0
    %602 = vmatprep.subr.mxu0 0.0
    %603 = vmatpush1.msra.mxu0 0.0
    %604 = vmatprep.subr.mxu0 0.0
    %605 = vmatpush1.msra.mxu0 0.0
    %606 = vmatprep.subr.mxu0 0.0
    %607 = vmatpush1.msra.mxu0 0.0
    %608 = vmatprep.mubr.f32.mxu0 %v452
    %609 = vmatmul.mubr.f32.gmra.mrb[0].mxu0 %v429
    %v610 = vpop.f32.mrb[0].mxu0
    %v611 = vadd.f32 0.0, %v610
    %v612 = vpop.f32.mrb[0].mxu0
    %613 = vdwg.mxu0
    %v614 = vmax.f32 %v521, %v611
    %v615 = vld [vmem:[#allocation2 + $0x630] sm:$0xff]
    %v616 = vld [vmem:[#allocation2 + $0x640] sm:$0xff]
    %v617 = vld [vmem:[#allocation2 + $0x650] sm:$0xff]
    %v618 = vld [vmem:[#allocation2 + $0x660] sm:$0xff]
    %v619 = vld [vmem:[#allocation2 + $0x670] sm:$0xff]
    %v620 = vld [vmem:[#allocation2 + $0x680] sm:$0xff]
    %v621 = vld [vmem:[#allocation2 + $0x690] sm:$0xff]
    %v622 = vld [vmem:[#allocation2 + $0x6a0] sm:$0xff]
    %v623 = vld [vmem:[#allocation2 + $0x6b0] sm:$0xff]
    %v624 = vld [vmem:[#allocation2 + $0x6c0] sm:$0xff]
    %v625 = vld [vmem:[#allocation2 + $0x6d0] ss:$0 sm:$0xff]
    %vm626 = vcmask 654336
    %v628 = vsel %vm626, %v614, 0
    %630 = vmatprep.subr.mxu0 0.0
    %631 = vmatpush1.msra.mxu0 %v615
    %632 = vmatprep.subr.mxu0 0.0
    %633 = vmatpush1.msra.mxu0 %v616
    %634 = vmatprep.subr.mxu0 0.0
    %635 = vmatpush1.msra.mxu0 %v617
    %636 = vmatprep.subr.mxu0 0.0
    %637 = vmatpush1.msra.mxu0 %v618
    %638 = vmatprep.subr.mxu0 0.0
    %639 = vmatpush1.msra.mxu0 %v619
    %640 = vmatprep.subr.mxu0 0.0
    %641 = vmatpush1.msra.mxu0 %v620
    %642 = vmatprep.subr.mxu0 0.0
    %643 = vmatpush1.msra.mxu0 %v621
    %644 = vmatprep.subr.mxu0 0.0
    %645 = vmatpush1.msra.mxu0 %v622
    %646 = vmatprep.subr.mxu0 0.0
    %647 = vmatpush1.msra.mxu0 %v623
    %648 = vmatprep.subr.mxu0 0.0
    %649 = vmatpush1.msra.mxu0 %v624
    %650 = vmatprep.subr.mxu0 0.0
    %651 = vmatpush1.msra.mxu0 0.0
    %652 = vmatprep.subr.mxu0 0.0
    %653 = vmatpush1.msra.mxu0 0.0
    %654 = vmatprep.subr.mxu0 0.0
    %655 = vmatpush1.msra.mxu0 0.0
    %656 = vmatprep.subr.mxu0 0.0
    %657 = vmatpush1.msra.mxu0 0.0
    %658 = vmatprep.subr.mxu0 0.0
    %659 = vmatpush1.msra.mxu0 0.0
    %660 = vmatprep.subr.mxu0 0.0
    %661 = vmatpush1.msra.mxu0 0.0
    %662 = vmatprep.subr.mxu0 0.0
    %663 = vmatpush1.msra.mxu0 0.0
    %664 = vmatprep.subr.mxu0 0.0
    %665 = vmatpush1.msra.mxu0 0.0
    %666 = vmatprep.subr.mxu0 0.0
    %667 = vmatpush1.msra.mxu0 0.0
    %668 = vmatprep.subr.mxu0 0.0
    %669 = vmatpush1.msra.mxu0 0.0
    %670 = vmatprep.subr.mxu0 0.0
    %671 = vmatpush1.msra.mxu0 0.0
    %672 = vmatprep.subr.mxu0 0.0
    %673 = vmatpush1.msra.mxu0 0.0
    %674 = vmatprep.subr.mxu0 0.0
    %675 = vmatpush1.msra.mxu0 0.0
    %676 = vmatprep.subr.mxu0 0.0
    %677 = vmatpush1.msra.mxu0 0.0
    %678 = vmatprep.subr.mxu0 0.0
    %679 = vmatpush1.msra.mxu0 0.0
    %680 = vmatprep.subr.mxu0 0.0
    %681 = vmatpush1.msra.mxu0 0.0
    %682 = vmatprep.subr.mxu0 0.0
    %683 = vmatpush1.msra.mxu0 0.0
    %684 = vmatprep.subr.mxu0 0.0
    %685 = vmatpush1.msra.mxu0 0.0
    %686 = vmatprep.subr.mxu0 0.0
    %687 = vmatpush1.msra.mxu0 0.0
    %688 = vmatprep.subr.mxu0 0.0
    %689 = vmatpush1.msra.mxu0 0.0
    %690 = vmatprep.subr.mxu0 0.0
    %691 = vmatpush1.msra.mxu0 0.0
    %692 = vmatprep.subr.mxu0 0.0
    %693 = vmatpush1.msra.mxu0 0.0
    %694 = vmatprep.mubr.f32.mxu0 0.0
    %695 = vmatmul.mubr.f32.gmra.mrb[0].mxu0 %v628
    %v696 = vpop.f32.mrb[0].mxu0
    %v697 = vadd.f32 %v625, %v696
    %v698 = vpop.f32.mrb[0].mxu0
    %699 = vdwg.mxu0
    %v700 = vmax.f32 %v697, 0.0
    %v701 = vld [vmem:[#allocation2 + $0x6e0] sm:$0xff]
    %v702 = vld [vmem:[#allocation2 + $0x6f0] sm:$0xff]
    %v703 = vld [vmem:[#allocation2 + $0x700] sm:$0xff]
    %v704 = vld [vmem:[#allocation2 + $0x710] sm:$0x3f]
    %v705 = vld [vmem:[#allocation2 + $0x720] ss:$0 sm:$0xff]
    %vm706 = vcmask 244736
    %v708 = vsel %vm706, %v700, 0
    %vm710 = vcmask 1045504
    %v712 = vsel %vm710, %v704, 0
    %714 = vmatprep.subr.mxu0 0.0
    %715 = vmatpush1.msra.mxu0 %v701
    %716 = vmatprep.subr.mxu0 0.0
    %717 = vmatpush1.msra.mxu0 %v702
    %718 = vmatprep.subr.mxu0 0.0
    %719 = vmatpush1.msra.mxu0 %v703
    %720 = vmatprep.subr.mxu0 0.0
    %721 = vmatpush1.msra.mxu0 %v712
    %722 = vmatprep.subr.mxu0 0.0
    %723 = vmatpush1.msra.mxu0 0.0
    %724 = vmatprep.subr.mxu0 0.0
    %725 = vmatpush1.msra.mxu0 0.0
    %726 = vmatprep.subr.mxu0 0.0
    %727 = vmatpush1.msra.mxu0 0.0
    %728 = vmatprep.subr.mxu0 0.0
    %729 = vmatpush1.msra.mxu0 0.0
    %730 = vmatprep.subr.mxu0 0.0
    %731 = vmatpush1.msra.mxu0 0.0
    %732 = vmatprep.subr.mxu0 0.0
    %733 = vmatpush1.msra.mxu0 0.0
    %734 = vmatprep.subr.mxu0 0.0
    %735 = vmatpush1.msra.mxu0 0.0
    %736 = vmatprep.subr.mxu0 0.0
    %737 = vmatpush1.msra.mxu0 0.0
    %738 = vmatprep.subr.mxu0 0.0
    %739 = vmatpush1.msra.mxu0 0.0
    %740 = vmatprep.subr.mxu0 0.0
    %741 = vmatpush1.msra.mxu0 0.0
    %742 = vmatprep.subr.mxu0 0.0
    %743 = vmatpush1.msra.mxu0 0.0
    %744 = vmatprep.subr.mxu0 0.0
    %745 = vmatpush1.msra.mxu0 0.0
    %746 = vmatprep.subr.mxu0 0.0
    %747 = vmatpush1.msra.mxu0 0.0
    %748 = vmatprep.subr.mxu0 0.0
    %749 = vmatpush1.msra.mxu0 0.0
    %750 = vmatprep.subr.mxu0 0.0
    %751 = vmatpush1.msra.mxu0 0.0
    %752 = vmatprep.subr.mxu0 0.0
    %753 = vmatpush1.msra.mxu0 0.0
    %754 = vmatprep.subr.mxu0 0.0
    %755 = vmatpush1.msra.mxu0 0.0
    %756 = vmatprep.subr.mxu0 0.0
    %757 = vmatpush1.msra.mxu0 0.0
    %758 = vmatprep.subr.mxu0 0.0
    %759 = vmatpush1.msra.mxu0 0.0
    %760 = vmatprep.subr.mxu0 0.0
    %761 = vmatpush1.msra.mxu0 0.0
    %762 = vmatprep.subr.mxu0 0.0
    %763 = vmatpush1.msra.mxu0 0.0
    %764 = vmatprep.subr.mxu0 0.0
    %765 = vmatpush1.msra.mxu0 0.0
    %766 = vmatprep.subr.mxu0 0.0
    %767 = vmatpush1.msra.mxu0 0.0
    %768 = vmatprep.subr.mxu0 0.0
    %769 = vmatpush1.msra.mxu0 0.0
    %770 = vmatprep.subr.mxu0 0.0
    %771 = vmatpush1.msra.mxu0 0.0
    %772 = vmatprep.subr.mxu0 0.0
    %773 = vmatpush1.msra.mxu0 0.0
    %774 = vmatprep.subr.mxu0 0.0
    %775 = vmatpush1.msra.mxu0 0.0
    %776 = vmatprep.subr.mxu0 0.0
    %777 = vmatpush1.msra.mxu0 0.0
    %778 = vmatprep.mubr.f32.mxu0 0.0
    %779 = vmatmul.mubr.f32.gmra.mrb[0].mxu0 %v708
    %v780 = vpop.f32.mrb[0].mxu0
    %v781 = vadd.f32 %v705, %v780
    %v782 = vpop.f32.mrb[0].mxu0
    %783 = vdwg.mxu0
    %v784 = vmax.f32 %v781, 0.0
    %v785 = vld [vmem:[#allocation2 + $0x730] sm:$0xff]
    %v786 = vld [vmem:[#allocation2 + $0x740] sm:$0x3]
    %v787 = vld [vmem:[#allocation2 + $0x750] ss:$0 sm:$0xff]
    %vm788 = vcmask 80896
    %v790 = vsel %vm788, %v784, 0
    %vm792 = vcmask 1041408
    %v794 = vsel %vm792, %v786, 0
    %796 = vmatprep.subr.mxu0 0.0
    %797 = vmatpush1.msra.mxu0 %v785
    %798 = vmatprep.subr.mxu0 0.0
    %799 = vmatpush1.msra.mxu0 %v794
    %800 = vmatprep.subr.mxu0 0.0
    %801 = vmatpush1.msra.mxu0 0.0
    %802 = vmatprep.subr.mxu0 0.0
    %803 = vmatpush1.msra.mxu0 0.0
    %804 = vmatprep.subr.mxu0 0.0
    %805 = vmatpush1.msra.mxu0 0.0
    %806 = vmatprep.subr.mxu0 0.0
    %807 = vmatpush1.msra.mxu0 0.0
    %808 = vmatprep.subr.mxu0 0.0
    %809 = vmatpush1.msra.mxu0 0.0
    %810 = vmatprep.subr.mxu0 0.0
    %811 = vmatpush1.msra.mxu0 0.0
    %812 = vmatprep.subr.mxu0 0.0
    %813 = vmatpush1.msra.mxu0 0.0
    %814 = vmatprep.subr.mxu0 0.0
    %815 = vmatpush1.msra.mxu0 0.0
    %816 = vmatprep.subr.mxu0 0.0
    %817 = vmatpush1.msra.mxu0 0.0
    %818 = vmatprep.subr.mxu0 0.0
    %819 = vmatpush1.msra.mxu0 0.0
    %820 = vmatprep.subr.mxu0 0.0
    %821 = vmatpush1.msra.mxu0 0.0
    %822 = vmatprep.subr.mxu0 0.0
    %823 = vmatpush1.msra.mxu0 0.0
    %824 = vmatprep.subr.mxu0 0.0
    %825 = vmatpush1.msra.mxu0 0.0
    %826 = vmatprep.subr.mxu0 0.0
    %827 = vmatpush1.msra.mxu0 0.0
    %828 = vmatprep.subr.mxu0 0.0
    %829 = vmatpush1.msra.mxu0 0.0
    %830 = vmatprep.subr.mxu0 0.0
    %831 = vmatpush1.msra.mxu0 0.0
    %832 = vmatprep.subr.mxu0 0.0
    %833 = vmatpush1.msra.mxu0 0.0
    %834 = vmatprep.subr.mxu0 0.0
    %835 = vmatpush1.msra.mxu0 0.0
    %836 = vmatprep.subr.mxu0 0.0
    %837 = vmatpush1.msra.mxu0 0.0
    %838 = vmatprep.subr.mxu0 0.0
    %839 = vmatpush1.msra.mxu0 0.0
    %840 = vmatprep.subr.mxu0 0.0
    %841 = vmatpush1.msra.mxu0 0.0
    %842 = vmatprep.subr.mxu0 0.0
    %843 = vmatpush1.msra.mxu0 0.0
    %844 = vmatprep.subr.mxu0 0.0
    %845 = vmatpush1.msra.mxu0 0.0
    %846 = vmatprep.subr.mxu0 0.0
    %847 = vmatpush1.msra.mxu0 0.0
    %848 = vmatprep.subr.mxu0 0.0
    %849 = vmatpush1.msra.mxu0 0.0
    %850 = vmatprep.subr.mxu0 0.0
    %851 = vmatpush1.msra.mxu0 0.0
    %852 = vmatprep.subr.mxu0 0.0
    %853 = vmatpush1.msra.mxu0 0.0
    %854 = vmatprep.subr.mxu0 0.0
    %855 = vmatpush1.msra.mxu0 0.0
    %856 = vmatprep.subr.mxu0 0.0
    %857 = vmatpush1.msra.mxu0 0.0
    %858 = vmatprep.subr.mxu0 0.0
    %859 = vmatpush1.msra.mxu0 0.0
    %860 = vmatprep.mubr.f32.mxu0 0.0
    %861 = vmatmul.mubr.f32.gmra.mrb[0].mxu0 %v790
    %v862 = vpop.f32.mrb[0].mxu0
    %v863 = vadd.f32 %v787, %v862
    %v864 = vpop.f32.mrb[0].mxu0
    %865 = vdwg.mxu0
    %866 = vst [vmem:[#allocation5] sm:$0x3] %v863
    // Predicated region
    $region14: #{forward.1} parent=1 // pred_check
      _
    $region15: #{forward.1} parent=1 // pred_check_branch
      %868 = sbr.rel (0) target = $region17
    $region16: #{forward.1} parent=1 // pred_region
      %s870 = ssub.s32 32, 32
      %871 = vsyncadd [#allocation4], %s870
      %s873 = sshll.u32 [#allocation5], 4
      %s874 = int_to_ptr.vmem [resolvable:$true] %s873
      %876 = dma.vmem_to_hbm [thread:$0]  %s874, 32, %s2, [#allocation4]
    $region17: #{forward.1} parent=1 // pred_fallthru
      _
    // Predicated region
    $region18: #{forward.1} parent=1 // pred_check
      _
    $region19: #{forward.1} parent=1 // pred_check_branch
      %878 = sbr.rel (0) target = $region21
    $region20: #{forward.1} parent=1 // pred_region
      %879 = dma.done [#allocation4], 32
    $region21: #{forward.1} parent=1 // pred_fallthru
      _
    %880 = vsyncpa [#allocation3], 1
    %881 = vsyncpa [#allocation4], 1

</llo_original>
